<compile_context>
chip_gen: v7x
topology: tpu7x:2x2x1
jax: 0.10.0
libtpu: 0.0.40
codegen_flags: <defaults>
</compile_context>

<pallas_src>
import jax
import jax.numpy as jnp
from jax import lax
from jax.experimental import pallas as pl
from jax.experimental.pallas import tpu as pltpu

BN_EPS = 0.001                        # matches ManualBN2d / torch BN_EPS
_VMEM_LIMIT = 64 * 1024 * 1024        # explicit scoped-VMEM budget


def _pick_hw_tile(hw, target=1024):
    """Largest divisor of hw that is <= target (prefer multiples of 128)."""
    if hw <= target:
        return hw
    for cand in range(target - target % 128, 0, -128):
        if cand > 0 and hw % cand == 0:
            return cand
    for cand in range(target, 0, -1):
        if hw % cand == 0:
            return cand
    return hw


def _pick_c_tile(c):
    """Channel tile for the fused expand+DW kernel (bounds VMEM; gives the
    kernel a 'parallel' outer grid dim for v7x's two TensorCores)."""
    if c <= 512:
        return c
    for cand in (512, 384, 256, 128, 64):
        if c % cand == 0:
            return cand
    return c


# ----------------------------------------------------------------------------
# Kernel A: training-mode BN fold for the 1x1 expand conv (stats only)
# ----------------------------------------------------------------------------
def _make_expand_stats_kernel(m_total):
    def kernel(x_ref, w_ref, g_ref, b_ref, scale_ref, offset_ref,
               sum_ref, sq_ref):
        n, i = pl.program_id(0), pl.program_id(1)
        first = jnp.logical_and(n == 0, i == 0)
        last = jnp.logical_and(n == pl.num_programs(0) - 1,
                               i == pl.num_programs(1) - 1)

        @pl.when(first)
        def _():
            sum_ref[...] = jnp.zeros_like(sum_ref)
            sq_ref[...] = jnp.zeros_like(sq_ref)

        # 1x1 conv tile == (Cexp, Cin) @ (Cin, t_hw); HW is the lane axis.
        y = jnp.dot(w_ref[...], x_ref[...], preferred_element_type=jnp.float32)
        sum_ref[...] += jnp.sum(y, axis=1, keepdims=True)
        sq_ref[...] += jnp.sum(y * y, axis=1, keepdims=True)

        @pl.when(last)
        def _():
            mean = sum_ref[...] * (1.0 / m_total)
            var = jnp.maximum(sq_ref[...] * (1.0 / m_total) - mean * mean, 0.0)
            scale = g_ref[...] * lax.rsqrt(var + BN_EPS)
            scale_ref[...] = scale
            offset_ref[...] = b_ref[...] - mean * scale

    return kernel


def expand_bn_stats(x3, w2, gamma, beta, *, t_hw_target=1024):
    """x3: (N, Cin, HW); w2: (Cexp, Cin); gamma/beta: (Cexp,).
    Returns per-channel (scale, offset), each (Cexp, 1) f32.
    Conv bias omitted on purpose (no-op under training-mode BN)."""
    N, Cin, HW = x3.shape
    Cexp = w2.shape[0]
    t_hw = _pick_hw_tile(HW, t_hw_target)
    n_t = HW // t_hw

    g2 = gamma.reshape(Cexp, 1).astype(jnp.float32)
    b2 = beta.reshape(Cexp, 1).astype(jnp.float32)

    cost = pl.CostEstimate(
        flops=int(2 * N * HW * Cin * Cexp + 4 * N * HW * Cexp),
        transcendentals=0,
        bytes_accessed=int(4 * (N * Cin * HW + Cexp * (Cin + 4))))

    return pl.pallas_call(
        _make_expand_stats_kernel(float(N * HW)),
        out_shape=(jax.ShapeDtypeStruct((Cexp, 1), jnp.float32),
                   jax.ShapeDtypeStruct((Cexp, 1), jnp.float32)),
        grid_spec=pltpu.PrefetchScalarGridSpec(
            num_scalar_prefetch=0,
            grid=(N, n_t),
            in_specs=[
                pl.BlockSpec((None, Cin, t_hw), lambda n, i: (n, 0, i)),
                pl.BlockSpec((Cexp, Cin), lambda n, i: (0, 0)),
                pl.BlockSpec((Cexp, 1), lambda n, i: (0, 0)),
                pl.BlockSpec((Cexp, 1), lambda n, i: (0, 0)),
            ],
            out_specs=(pl.BlockSpec((Cexp, 1), lambda n, i: (0, 0)),
                       pl.BlockSpec((Cexp, 1), lambda n, i: (0, 0))),
            scratch_shapes=[pltpu.VMEM((Cexp, 1), jnp.float32),
                            pltpu.VMEM((Cexp, 1), jnp.float32)],
        ),
        compiler_params=pltpu.CompilerParams(
            dimension_semantics=("arbitrary", "arbitrary"),
            vmem_limit_bytes=_VMEM_LIMIT),
        cost_estimate=cost,
    )(x3, w2, g2, b2)


# ----------------------------------------------------------------------------
# Kernel B: fused (1x1 expand [+BN fold + ReLU]) + depthwise kxk conv
#           + training-mode BN + ReLU, lane-dense flattened-HW layout.
# ----------------------------------------------------------------------------
def _make_fused_expand_dw_kernel(m_total, k, H, W, lo, apply_expand_act, relu):
    HW = H * W
    base = lo * W + lo            # flat offset of interior (row 0, col 0)

    def kernel(x_ref, we_ref, se_ref, oe_ref, wd_ref, g_ref, b_ref, o_ref,
               exp_ref, sum_ref, sq_ref):
        # grid = (channel tile, phase, batch); channel tile is "parallel".
        phase = pl.program_id(1)
        n = pl.program_id(2)
        first = jnp.logical_and(phase == 0, n == 0)

        @pl.when(first)
        def _():
            # zero once per channel tile: the halo of exp_ref must stay 0
            exp_ref[...] = jnp.zeros_like(exp_ref)
            sum_ref[...] = jnp.zeros_like(sum_ref)
            sq_ref[...] = jnp.zeros_like(sq_ref)

        # ---- expand 1x1 conv recomputed on the fly (never touches HBM) ------
        ye = jnp.dot(we_ref[...], x_ref[...], preferred_element_type=jnp.float32)
        if apply_expand_act:                       # expand BN fold + ReLU
            ye = jnp.maximum(ye * se_ref[...] + oe_ref[...], 0.0)
        # write the interior of the H-padded, HW-flattened row buffer
        exp_ref[:, base:base + HW] = ye

        # ---- depthwise kxk conv: k*k shifted flat MACs (stride 1) -----------
        # column index of each flattened output position (for W zero-padding)
        col = lax.broadcasted_iota(jnp.int32, (1, HW), 1) % W
        acc = None
        for di in range(k):
            for dj in range(k):
                s = di * W + dj                    # static slice start (>= 0)
                tap = exp_ref[:, s:s + HW]         # (t_c, HW)
                if dj != lo:                       # emulate zero W-padding
                    valid = jnp.logical_and(col >= lo - dj, col < W + lo - dj)
                    tap = jnp.where(valid, tap, 0.0)
                t = di * k + dj
                contrib = tap * wd_ref[:, t:t + 1]
                acc = contrib if acc is None else acc + contrib
        y = acc                                    # (t_c, HW), f32

        @pl.when(phase == 0)
        def _():
            sum_ref[...] += jnp.sum(y, axis=1, keepdims=True)
            sq_ref[...] += jnp.sum(y * y, axis=1, keepdims=True)
            # NOTE: no o_ref write in phase 0 (output block index pinned to 0).

        @pl.when(jnp.logical_and(phase == 1, n == 0))
        def _():
            mean = sum_ref[...] * (1.0 / m_total)
            var = jnp.maximum(sq_ref[...] * (1.0 / m_total) - mean * mean, 0.0)
            scale = g_ref[...] * lax.rsqrt(var + BN_EPS)
            offset = b_ref[...] - mean * scale
            sum_ref[...] = scale                   # scratch now holds scale
            sq_ref[...] = offset                   # scratch now holds offset

        @pl.when(phase == 1)
        def _():
            out = y * sum_ref[...] + sq_ref[...]
            if relu:
                out = jnp.maximum(out, 0.0)
            o_ref[...] = out.astype(o_ref.dtype)   # lane-dense (HW) store

    return kernel


def fused_expand_dw_conv_bn_relu(x3, we, scale_e, offset_e, wd, gamma, beta, *,
                                 kernel_size, H, W, apply_expand_act,
                                 relu=True):
    """x3: (N, Cin, H*W); we: (C, Cin); scale_e/offset_e: (C, 1);
    wd: (C, k*k) depthwise taps; gamma/beta: (C,).  Returns (N, C, H*W)."""
    N, Cin, HW = x3.shape
    C = we.shape[0]
    k = kernel_size
    assert HW == H * W
    pad = k - 1
    lo = pad // 2
    Hp = H + pad
    L = Hp * W + pad              # H-padded flat buffer + left/right slack

    t_c = _pick_c_tile(C)
    n_c = C // t_c

    g2 = gamma.reshape(C, 1).astype(jnp.float32)
    b2 = beta.reshape(C, 1).astype(jnp.float32)

    cost = pl.CostEstimate(
        flops=int(2 * (2 * N * HW * Cin * C + 2 * k * k * N * HW * C
                       + 4 * N * HW * C)),
        transcendentals=0,
        bytes_accessed=int(4 * (2 * n_c * N * Cin * HW + N * C * HW
                                + C * (Cin + k * k + 4))))

    kernel = _make_fused_expand_dw_kernel(float(N * HW), k, H, W, lo,
                                          apply_expand_act, relu)

    return pl.pallas_call(
        kernel,
        out_shape=jax.ShapeDtypeStruct((N, C, HW), x3.dtype),
        grid_spec=pltpu.PrefetchScalarGridSpec(
            num_scalar_prefetch=0,
            grid=(n_c, 2, N),          # (channel tile, phase, batch)
            in_specs=[
                pl.BlockSpec((None, Cin, HW), lambda c, p, n: (n, 0, 0)),
                pl.BlockSpec((t_c, Cin), lambda c, p, n: (c, 0)),
                pl.BlockSpec((t_c, 1), lambda c, p, n: (c, 0)),
                pl.BlockSpec((t_c, 1), lambda c, p, n: (c, 0)),
                pl.BlockSpec((t_c, k * k), lambda c, p, n: (c, 0)),
                pl.BlockSpec((t_c, 1), lambda c, p, n: (c, 0)),
                pl.BlockSpec((t_c, 1), lambda c, p, n: (c, 0)),
            ],
            # phase 0: output block pinned to 0 -> stays resident, no writeback
            # (each output block is written exactly once, in phase 1).
            out_specs=pl.BlockSpec((None, t_c, HW),
                                   lambda c, p, n: (n * p, c, 0)),
            scratch_shapes=[
                pltpu.VMEM((t_c, L), jnp.float32),   # expanded padded rows
                pltpu.VMEM((t_c, 1), jnp.float32),   # sum   -> scale
                pltpu.VMEM((t_c, 1), jnp.float32),   # sumsq -> offset
            ],
        ),
        compiler_params=pltpu.CompilerParams(
            dimension_semantics=("parallel", "arbitrary", "arbitrary"),
            vmem_limit_bytes=_VMEM_LIMIT),
        cost_estimate=cost,
    )(x3, we, scale_e, offset_e, wd, g2, b2)


# ----------------------------------------------------------------------------
# Kernel C: 1x1 conv + training-mode BN + optional ReLU (+ fused residual)
# ----------------------------------------------------------------------------
def _make_pw_kernel(m_total, relu, has_res):
    def kernel(*refs):
        if has_res:
            x_ref, w_ref, g_ref, b_ref, res_ref, o_ref, sum_ref, sq_ref = refs
        else:
            x_ref, w_ref, g_ref, b_ref, o_ref, sum_ref, sq_ref = refs
            res_ref = None

        phase = pl.program_id(0)        # 0: accumulate stats, 1: normalize
        n = pl.program_id(1)            # batch index
        i = pl.program_id(2)            # HW tile index
        first = jnp.logical_and(n == 0, i == 0)

        # 1x1 conv == (Cout, Cin) @ (Cin, t_hw); HW is the lane axis.
        y = jnp.dot(w_ref[...], x_ref[...], preferred_element_type=jnp.float32)

        @pl.when(jnp.logical_and(phase == 0, first))
        def _():
            sum_ref[...] = jnp.zeros_like(sum_ref)
            sq_ref[...] = jnp.zeros_like(sq_ref)

        @pl.when(phase == 0)
        def _():
            sum_ref[...] += jnp.sum(y, axis=1, keepdims=True)
            sq_ref[...] += jnp.sum(y * y, axis=1, keepdims=True)
            # NOTE: no o_ref write in phase 0 (out block index is pinned to 0).

        @pl.when(jnp.logical_and(phase == 1, first))
        def _():
            mean = sum_ref[...] * (1.0 / m_total)
            var = jnp.maximum(sq_ref[...] * (1.0 / m_total) - mean * mean, 0.0)
            scale = g_ref[...] * lax.rsqrt(var + BN_EPS)
            offset = b_ref[...] - mean * scale
            sum_ref[...] = scale        # reuse scratch: sum_ref holds scale
            sq_ref[...] = offset        # sq_ref holds offset

        @pl.when(phase == 1)
        def _():
            out = y * sum_ref[...] + sq_ref[...]
            if has_res:
                out = out + res_ref[...].astype(jnp.float32)
            if relu:
                out = jnp.maximum(out, 0.0)
            o_ref[...] = out.astype(o_ref.dtype)

    return kernel


def pw_conv_bn_act(x3, w2, gamma, beta, *, relu, residual=None,
                   t_hw_target=1024):
    """x3: (N, Cin, HW); w2: (Cout, Cin); gamma/beta: (Cout,);
    residual: optional (N, Cout, HW).  Conv bias omitted (no-op under BN)."""
    N, Cin, HW = x3.shape
    Cout = w2.shape[0]
    t_hw = _pick_hw_tile(HW, t_hw_target)
    n_t = HW // t_hw

    g2 = gamma.reshape(Cout, 1).astype(jnp.float32)
    b2 = beta.reshape(Cout, 1).astype(jnp.float32)

    has_res = residual is not None
    in_specs = [
        pl.BlockSpec((None, Cin, t_hw), lambda p, n, i: (n, 0, i)),
        pl.BlockSpec((Cout, Cin), lambda p, n, i: (0, 0)),
        pl.BlockSpec((Cout, 1), lambda p, n, i: (0, 0)),
        pl.BlockSpec((Cout, 1), lambda p, n, i: (0, 0)),
    ]
    args = [x3, w2, g2, b2]
    if has_res:
        # residual only needed (and only fetched) in phase 1
        in_specs.append(
            pl.BlockSpec((None, Cout, t_hw), lambda p, n, i: (n * p, 0, i * p)))
        args.append(residual)

    cost = pl.CostEstimate(
        flops=int(4 * N * HW * Cin * Cout + 6 * N * HW * Cout),
        transcendentals=0,
        bytes_accessed=int(4 * (2 * N * Cin * HW
                                + (2 if has_res else 1) * N * Cout * HW
                                + Cout * (Cin + 2))))

    kernel = _make_pw_kernel(float(N * HW), relu, has_res)

    return pl.pallas_call(
        kernel,
        out_shape=jax.ShapeDtypeStruct((N, Cout, HW), x3.dtype),
        grid_spec=pltpu.PrefetchScalarGridSpec(
            num_scalar_prefetch=0,
            grid=(2, N, n_t),            # phase is the outer (slow) axis
            in_specs=in_specs,
            out_specs=pl.BlockSpec((None, Cout, t_hw),
                                   lambda p, n, i: (n * p, 0, i * p)),
            scratch_shapes=[pltpu.VMEM((Cout, 1), jnp.float32),
                            pltpu.VMEM((Cout, 1), jnp.float32)],
        ),
        compiler_params=pltpu.CompilerParams(
            dimension_semantics=("arbitrary", "arbitrary", "arbitrary"),
            vmem_limit_bytes=_VMEM_LIMIT),
        cost_estimate=cost,
    )(*args)


# ----------------------------------------------------------------------------
# MBConv forward (se=False, stride=1, default channel sizes)
# ----------------------------------------------------------------------------
def mbconv_forward(x, e_w, e_g, e_bt, d_w, d_g, d_bt, r_w, r_g, r_bt, *,
                   expand_ratio, kernel_size, stride=1, skip=True):
    """x: (N, Cin, H, W) NCHW.  Returns (N, Cout, H, W)."""
    # TODO(synk): stride > 1, SE branch and drop-connect not implemented.
    assert stride == 1
    N, Cin, H, W = x.shape
    Cout = r_w.shape[0]
    HW = H * W
    x3 = x.reshape(N, Cin, HW)                      # free reshape (contiguous)

    if expand_ratio != 1:
        hidden = e_w.shape[0]
        we = e_w.reshape(hidden, Cin).astype(jnp.float32)
        scale_e, offset_e = expand_bn_stats(x3, we, e_g, e_bt)
        apply_expand_act = True
    else:
        # TODO(synk): a dedicated non-fused DW kernel would avoid the identity
        # matmul when expand_ratio == 1 (not exercised here).
        hidden = Cin
        we = jnp.eye(Cin, dtype=jnp.float32)
        scale_e = jnp.ones((Cin, 1), jnp.float32)
        offset_e = jnp.zeros((Cin, 1), jnp.float32)
        apply_expand_act = False

    wd = d_w.reshape(hidden, kernel_size * kernel_size).astype(jnp.float32)
    h3 = fused_expand_dw_conv_bn_relu(
        x3, we, scale_e, offset_e, wd, d_g, d_bt,
        kernel_size=kernel_size, H=H, W=W,
        apply_expand_act=apply_expand_act, relu=True)

    res3 = x3 if (skip and stride == 1 and Cin == Cout) else None
    rw2 = r_w.reshape(Cout, hidden).astype(jnp.float32)
    y3 = pw_conv_bn_act(h3, rw2, r_g, r_bt, relu=False, residual=res3)
    return y3.reshape(N, Cout, H, W)


# ----------------------------------------------------------------------------
# Pure-JAX reference matching the PyTorch module (training-mode BN, with biases)
# ----------------------------------------------------------------------------
def _bn_train_ref(y, gamma, beta):
    mean = y.mean(axis=(0, 2, 3), keepdims=True)
    var = ((y - mean) ** 2).mean(axis=(0, 2, 3), keepdims=True)   # biased
    return ((y - mean) / jnp.sqrt(var + BN_EPS)
            * gamma[None, :, None, None] + beta[None, :, None, None])


def _pw_ref(x, w, b, gamma, beta, relu):
    Cout, Cin = w.shape[0], w.shape[1]
    y = jnp.einsum("nchw,oc->nohw", x, w.reshape(Cout, Cin),
                   precision=lax.Precision.HIGHEST)
    y = y + b[None, :, None, None]
    y = _bn_train_ref(y, gamma, beta)
    return jnp.maximum(y, 0.0) if relu else y


def _dw_ref(x, w, b, gamma, beta, k, relu):
    C = x.shape[1]
    pad = k - 1
    lo, hi = pad // 2, pad - pad // 2
    y = lax.conv_general_dilated(
        x, w, window_strides=(1, 1), padding=((lo, hi), (lo, hi)),
        dimension_numbers=("NCHW", "OIHW", "NCHW"),
        feature_group_count=C, precision=lax.Precision.HIGHEST)
    y = y + b[None, :, None, None]
    y = _bn_train_ref(y, gamma, beta)
    return jnp.maximum(y, 0.0) if relu else y


def _mbconv_reference(x, e_w, e_b, e_g, e_bt, d_w, d_b, d_g, d_bt,
                      r_w, r_b, r_g, r_bt, *, kernel_size):
    h = _pw_ref(x, e_w, e_b, e_g, e_bt, relu=True)
    h = _dw_ref(h, d_w, d_b, d_g, d_bt, kernel_size, relu=True)
    h = _pw_ref(h, r_w, r_b, r_g, r_bt, relu=False)
    return h + x      # skip: stride==1 and in==out channels


# ----------------------------------------------------------------------------
if __name__ == "__main__":
    # Small shapes: N=2, Cin=Cout=4, H=W=16, expand_ratio=2 -> hidden=8, k=3.
    N, Cin, H, W = 2, 4, 16, 16
    Cout = 4
    expand_ratio = 2
    k = 3
    hidden = round(expand_ratio * Cin)

    f32 = jnp.float32
    keys = jax.random.split(jax.random.PRNGKey(0), 13)

    e_w = jax.random.normal(keys[0], (hidden, Cin, 1, 1), f32) * 0.5
    e_b = jax.random.normal(keys[1], (hidden,), f32) * 0.1
    e_g = 1.0 + 0.1 * jax.random.normal(keys[2], (hidden,), f32)
    e_bt = 0.1 * jax.random.normal(keys[3], (hidden,), f32)

    d_w = jax.random.normal(keys[4], (hidden, 1, k, k), f32) * 0.3
    d_b = jax.random.normal(keys[5], (hidden,), f32) * 0.1
    d_g = 1.0 + 0.1 * jax.random.normal(keys[6], (hidden,), f32)
    d_bt = 0.1 * jax.random.normal(keys[7], (hidden,), f32)

    r_w = jax.random.normal(keys[8], (Cout, hidden, 1, 1), f32) * 0.5
    r_b = jax.random.normal(keys[9], (Cout,), f32) * 0.1
    r_g = 1.0 + 0.1 * jax.random.normal(keys[10], (Cout,), f32)
    r_bt = 0.1 * jax.random.normal(keys[11], (Cout,), f32)

    x = jax.random.normal(keys[12], (N, Cin, H, W), f32)

    y = mbconv_forward(x, e_w, e_g, e_bt, d_w, d_g, d_bt, r_w, r_g, r_bt,
                       expand_ratio=expand_ratio, kernel_size=k, stride=1)
    y = jax.block_until_ready(y)

    y_ref = _mbconv_reference(x, e_w, e_b, e_g, e_bt, d_w, d_b, d_g, d_bt,
                              r_w, r_b, r_g, r_bt, kernel_size=k)
    y_ref = jax.block_until_ready(y_ref)

    assert y.shape == (N, Cout, H, W)
    max_err = float(jnp.max(jnp.abs(y - y_ref)))
    assert jnp.allclose(y, y_ref, rtol=1e-3, atol=1e-3), max_err

    print("KERNEL_OK")
</pallas_src>

<mosaic_0001>
module attributes {stable_mosaic.version = 11 : i64} {
  func.func @kernel(%arg0: i32, %arg1: i32, %arg2: memref<1x4x256xf32, #tpu.memory_space<vmem>>, %arg3: memref<8x4xf32, #tpu.memory_space<vmem>>, %arg4: memref<8x1xf32, #tpu.memory_space<vmem>>, %arg5: memref<8x1xf32, #tpu.memory_space<vmem>>, %arg6: memref<8x1xf32, #tpu.memory_space<vmem>>, %arg7: memref<8x1xf32, #tpu.memory_space<vmem>>, %arg8: memref<8x1xf32, #tpu.memory_space<vmem>>, %arg9: memref<8x1xf32, #tpu.memory_space<vmem>>) attributes {dimension_semantics = [#tpu.dimension_semantics<arbitrary>, #tpu.dimension_semantics<arbitrary>], iteration_bounds = array<i64: 2, 1>, scalar_prefetch = 0 : i64, scratch_operands = 2 : i64, tpu.core_type = #tpu.core_type<tc>, window_params = [{transform_indices = @transform_0, window_bounds = array<i64: 1, 4, 256>}, {pipeline_mode = #tpu.pipeline_mode<synchronous>, transform_indices = @transform_1, window_bounds = array<i64: 8, 4>}, {pipeline_mode = #tpu.pipeline_mode<synchronous>, transform_indices = @transform_2, window_bounds = array<i64: 8, 1>}, {pipeline_mode = #tpu.pipeline_mode<synchronous>, transform_indices = @transform_3, window_bounds = array<i64: 8, 1>}, {pipeline_mode = #tpu.pipeline_mode<synchronous>, transform_indices = @transform_4, window_bounds = array<i64: 8, 1>}, {pipeline_mode = #tpu.pipeline_mode<synchronous>, transform_indices = @transform_5, window_bounds = array<i64: 8, 1>}]} {
    %c0_i32 = arith.constant 0 : i32
    %0 = arith.cmpi eq, %arg0, %c0_i32 : i32
    %c0_i32_0 = arith.constant 0 : i32
    %1 = arith.cmpi eq, %arg1, %c0_i32_0 : i32
    %2 = arith.andi %0, %1 : i1
    %c1_i32 = arith.constant 1 : i32
    %3 = arith.cmpi eq, %arg0, %c1_i32 : i32
    %c0_i32_1 = arith.constant 0 : i32
    %4 = arith.cmpi eq, %arg1, %c0_i32_1 : i32
    %5 = arith.andi %3, %4 : i1
    %6 = arith.extui %2 : i1 to i32
    %c0_i32_2 = arith.constant 0 : i32
    %7 = arith.cmpi ne, %6, %c0_i32_2 : i32
    scf.if %7 {
      %cst_18 = arith.constant 0.000000e+00 : f32
      %25 = vector.broadcast %cst_18 : f32 to vector<8x1xf32>
      %c0_19 = arith.constant 0 : index
      %c0_20 = arith.constant 0 : index
      %26 = vector.load %arg8[%c0_19, %c0_20] : memref<8x1xf32, #tpu.memory_space<vmem>>, vector<8x1xf32>
      tpu.vector_store %arg8[%c0_19, %c0_20], %25 {strides = array<i32>} : memref<8x1xf32, #tpu.memory_space<vmem>>, vector<8x1xf32>,
      %cst_21 = arith.constant 0.000000e+00 : f32
      %27 = vector.broadcast %cst_21 : f32 to vector<8x1xf32>
      %c0_22 = arith.constant 0 : index
      %c0_23 = arith.constant 0 : index
      %28 = vector.load %arg9[%c0_22, %c0_23] : memref<8x1xf32, #tpu.memory_space<vmem>>, vector<8x1xf32>
      tpu.vector_store %arg9[%c0_22, %c0_23], %27 {strides = array<i32>} : memref<8x1xf32, #tpu.memory_space<vmem>>, vector<8x1xf32>,
    } else {
    }
    %c0 = arith.constant 0 : index
    %c0_3 = arith.constant 0 : index
    %8 = vector.load %arg3[%c0, %c0_3] : memref<8x4xf32, #tpu.memory_space<vmem>>, vector<8x4xf32>
    %c0_4 = arith.constant 0 : index
    %c0_5 = arith.constant 0 : index
    %c0_6 = arith.constant 0 : index
    %9 = vector.load %arg2[%c0_4, %c0_5, %c0_6] : memref<1x4x256xf32, #tpu.memory_space<vmem>>, vector<1x4x256xf32>
    %10 = vector.shape_cast %9 : vector<1x4x256xf32> to vector<4x256xf32>
    %cst = arith.constant dense<0.000000e+00> : vector<8x256xf32>
    %11 = tpu.matmul %8, %10, %cst {dimension_numbers = #tpu.dot_dimension_numbers<[1], [0], [0], [1], [0, 0, 1, 1], [], []>} : vector<8x4xf32>, vector<4x256xf32>, vector<8x256xf32> -> vector<8x256xf32>
    %c0_7 = arith.constant 0 : index
    %c0_8 = arith.constant 0 : index
    %12 = vector.load %arg8[%c0_7, %c0_8] : memref<8x1xf32, #tpu.memory_space<vmem>>, vector<8x1xf32>
    %cst_9 = arith.constant dense<0.000000e+00> : vector<8xf32>
    %13 = vector.multi_reduction <add>, %11, %cst_9 [1] : vector<8x256xf32> to vector<8xf32>
    %14 = vector.shape_cast %13 : vector<8xf32> to vector<8x1xf32>
    %15 = arith.addf %12, %14 : vector<8x1xf32>
    %c0_10 = arith.constant 0 : index
    %c0_11 = arith.constant 0 : index
    %16 = vector.load %arg8[%c0_10, %c0_11] : memref<8x1xf32, #tpu.memory_space<vmem>>, vector<8x1xf32>
    tpu.vector_store %arg8[%c0_10, %c0_11], %15 {strides = array<i32>} : memref<8x1xf32, #tpu.memory_space<vmem>>, vector<8x1xf32>,
    %c0_12 = arith.constant 0 : index
    %c0_13 = arith.constant 0 : index
    %17 = vector.load %arg9[%c0_12, %c0_13] : memref<8x1xf32, #tpu.memory_space<vmem>>, vector<8x1xf32>
    %18 = arith.mulf %11, %11 : vector<8x256xf32>
    %cst_14 = arith.constant dense<0.000000e+00> : vector<8xf32>
    %19 = vector.multi_reduction <add>, %18, %cst_14 [1] : vector<8x256xf32> to vector<8xf32>
    %20 = vector.shape_cast %19 : vector<8xf32> to vector<8x1xf32>
    %21 = arith.addf %17, %20 : vector<8x1xf32>
    %c0_15 = arith.constant 0 : index
    %c0_16 = arith.constant 0 : index
    %22 = vector.load %arg9[%c0_15, %c0_16] : memref<8x1xf32, #tpu.memory_space<vmem>>, vector<8x1xf32>
    tpu.vector_store %arg9[%c0_15, %c0_16], %21 {strides = array<i32>} : memref<8x1xf32, #tpu.memory_space<vmem>>, vector<8x1xf32>,
    %23 = arith.extui %5 : i1 to i32
    %c0_i32_17 = arith.constant 0 : i32
    %24 = arith.cmpi ne, %23, %c0_i32_17 : i32
    scf.if %24 {
      %c0_18 = arith.constant 0 : index
      %c0_19 = arith.constant 0 : index
      %25 = vector.load %arg8[%c0_18, %c0_19] : memref<8x1xf32, #tpu.memory_space<vmem>>, vector<8x1xf32>
      %cst_20 = arith.constant 0.001953125 : f32
      %26 = vector.broadcast %cst_20 : f32 to vector<8x1xf32>
      %27 = arith.mulf %25, %26 : vector<8x1xf32>
      %c0_21 = arith.constant 0 : index
      %c0_22 = arith.constant 0 : index
      %28 = vector.load %arg9[%c0_21, %c0_22] : memref<8x1xf32, #tpu.memory_space<vmem>>, vector<8x1xf32>
      %cst_23 = arith.constant 0.001953125 : f32
      %29 = vector.broadcast %cst_23 : f32 to vector<8x1xf32>
      %30 = arith.mulf %28, %29 : vector<8x1xf32>
      %31 = arith.mulf %27, %27 : vector<8x1xf32>
      %32 = arith.subf %30, %31 : vector<8x1xf32>
      %cst_24 = arith.constant 0.000000e+00 : f32
      %33 = vector.broadcast %cst_24 : f32 to vector<8x1xf32>
      %34 = arith.maximumf %32, %33 : vector<8x1xf32>
      %c0_25 = arith.constant 0 : index
      %c0_26 = arith.constant 0 : index
      %35 = vector.load %arg4[%c0_25, %c0_26] : memref<8x1xf32, #tpu.memory_space<vmem>>, vector<8x1xf32>
      %cst_27 = arith.constant 1.000000e-03 : f32
      %36 = vector.broadcast %cst_27 : f32 to vector<8x1xf32>
      %37 = arith.addf %34, %36 : vector<8x1xf32>
      %38 = math.rsqrt %37 : vector<8x1xf32>
      %39 = arith.mulf %35, %38 : vector<8x1xf32>
      %c0_28 = arith.constant 0 : index
      %c0_29 = arith.constant 0 : index
      %40 = vector.load %arg6[%c0_28, %c0_29] : memref<8x1xf32, #tpu.memory_space<vmem>>, vector<8x1xf32>
      tpu.vector_store %arg6[%c0_28, %c0_29], %39 {strides = array<i32>} : memref<8x1xf32, #tpu.memory_space<vmem>>, vector<8x1xf32>,
      %c0_30 = arith.constant 0 : index
      %c0_31 = arith.constant 0 : index
      %41 = vector.load %arg5[%c0_30, %c0_31] : memref<8x1xf32, #tpu.memory_space<vmem>>, vector<8x1xf32>
      %42 = arith.mulf %27, %39 : vector<8x1xf32>
      %43 = arith.subf %41, %42 : vector<8x1xf32>
      %c0_32 = arith.constant 0 : index
      %c0_33 = arith.constant 0 : index
      %44 = vector.load %arg7[%c0_32, %c0_33] : memref<8x1xf32, #tpu.memory_space<vmem>>, vector<8x1xf32>
      tpu.vector_store %arg7[%c0_32, %c0_33], %43 {strides = array<i32>} : memref<8x1xf32, #tpu.memory_space<vmem>>, vector<8x1xf32>,
    } else {
    }
    return
  }
  func.func @transform_0(%arg0: i32, %arg1: i32) -> (i32, i32, i32) {
    %c0_i32 = arith.constant 0 : i32
    %c0_i32_0 = arith.constant 0 : i32
    return %arg0, %c0_i32, %arg1 : i32, i32, i32
  }
  func.func @transform_1(%arg0: i32, %arg1: i32) -> (i32, i32) {
    %c0_i32 = arith.constant 0 : i32
    %c0_i32_0 = arith.constant 0 : i32
    %c0_i32_1 = arith.constant 0 : i32
    return %c0_i32, %c0_i32_0 : i32, i32
  }
  func.func @transform_2(%arg0: i32, %arg1: i32) -> (i32, i32) {
    %c0_i32 = arith.constant 0 : i32
    %c0_i32_0 = arith.constant 0 : i32
    %c0_i32_1 = arith.constant 0 : i32
    return %c0_i32, %c0_i32_0 : i32, i32
  }
  func.func @transform_3(%arg0: i32, %arg1: i32) -> (i32, i32) {
    %c0_i32 = arith.constant 0 : i32
    %c0_i32_0 = arith.constant 0 : i32
    %c0_i32_1 = arith.constant 0 : i32
    return %c0_i32, %c0_i32_0 : i32, i32
  }
  func.func @transform_4(%arg0: i32, %arg1: i32) -> (i32, i32) {
    %c0_i32 = arith.constant 0 : i32
    %c0_i32_0 = arith.constant 0 : i32
    %c0_i32_1 = arith.constant 0 : i32
    return %c0_i32, %c0_i32_0 : i32, i32
  }
  func.func @transform_5(%arg0: i32, %arg1: i32) -> (i32, i32) {
    %c0_i32 = arith.constant 0 : i32
    %c0_i32_0 = arith.constant 0 : i32
    %c0_i32_1 = arith.constant 0 : i32
    return %c0_i32, %c0_i32_0 : i32, i32
  }
}

</mosaic_0001>

<llo_original>
// kernel: tpu_custom_call.1
$region0: #{tpu_custom_call.1}
  #allocation0 [shape = 'u32[]', space=smem, size = 0x4, offset = 0x4, fixed_abs, tag = 'smem constant byte address 0x4 - core index']
  #allocation1 [shape = 'u32[144,128]{1,0:T(1,128)}', space=vmem, size = 0x12000, scoped, tag = 'internal scratch']
  #allocation2 [shape = 'f32[8,1]{1,0:T(8,128)}', space=vmem, size = 0x1000, scoped, tag = 'scratch operand']
  #allocation3 [shape = 'f32[8,1]{1,0:T(8,128)}', space=vmem, size = 0x1000, scoped, tag = 'scratch operand']
  %s0 = inlined_call_operand.hbm [shape: f32[2,4,256], index: 0, kind: input, shape index: {}]
  %s1 = inlined_call_operand.hbm [shape: f32[8,4], index: 1, kind: input, shape index: {}]
  %s2 = inlined_call_operand.hbm [shape: f32[8,1], index: 2, kind: input, shape index: {}]
  %s3 = inlined_call_operand.hbm [shape: f32[8,1], index: 3, kind: input, shape index: {}]
  %s4 = inlined_call_operand.hbm [shape: f32[8,1], index: 4, kind: output, shape index: {0}]
  %s5 = inlined_call_operand.hbm [shape: f32[8,1], index: 5, kind: output, shape index: {1}]
  %6 = xla_tuple %s4, %s5
  %s7 = sld [smem:[#allocation0]]
  $region81: #{tpu_custom_call.1} parent=0
    _
  %s9 = ssub.s32 1, %s7
  %s10 = scalar_select 0, %s9, %s7
  $region1: #{tpu_custom_call.1} parent=0
    #allocation4 [shape = 'u8[8192]{0}', space=vmem, size = 0x2000, scoped, tag = 'input window, operand 0']
    #allocation5 [shape = 's32[2]{0}', space=sflag, size = 0x8, scoped, tag = 'scoped memory for tpu_custom_call.1']
    #allocation6 [shape = 's32[2]{0}', space=sflag, size = 0x8, scoped, tag = 'scoped memory for tpu_custom_call.1']
    #allocation7 [shape = 'u8[4096]{0}', space=vmem, size = 0x1000, scoped, tag = 'input window, operand 1, single buffered']
    #allocation8 [shape = 's32[1]{0}', space=sflag, size = 0x4, scoped, tag = 'scoped memory for tpu_custom_call.1']
    #allocation9 [shape = 'u8[4096]{0}', space=vmem, size = 0x1000, scoped, tag = 'input window, operand 2, single buffered']
    #allocation10 [shape = 'u8[4096]{0}', space=vmem, size = 0x1000, scoped, tag = 'input window, operand 3, single buffered']
    #allocation11 [shape = 's32[1]{0}', space=sflag, size = 0x4, scoped, tag = 'scoped memory for tpu_custom_call.1']
    #allocation12 [shape = 'u8[4096]{0}', space=vmem, size = 0x1000, scoped, tag = 'output window, operand 0, single buffered']
    #allocation13 [shape = 'u8[4096]{0}', space=vmem, size = 0x1000, scoped, tag = 'output window, operand 1, single buffered']
    #allocation14 [shape = 's32[1]{0}', space=sflag, size = 0x4, scoped, tag = 'scoped memory for tpu_custom_call.1']
    %11 = vsyncpa [#allocation5], 0
    %s12 = scalar_lea.sflag [#allocation5], 1
    %13 = vsyncpa %s12, 0
    %14 = vsyncpa [#allocation8], 0
    %15 = vsyncpa [#allocation11], 0
    %16 = vsyncpa [#allocation6], 0
    %17 = vsyncpa [#allocation14], 0
    loop: start=0, step=1, limit=4
    $region2: #{tpu_custom_call.1} parent=1 // loop_pre_header
      _
    $region3: #{tpu_custom_call.1} parent=1 // loop_header
      %s19 = sphi 0, %s23
      %p20 = scmp.ge.s32.totalorder %s19, 4
      %s26 = sphi 0, %s38
      %s27 = sphi 0, %s34
      %s28 = sphi 0, %s26
      %s29 = sphi 0, %s27
      %s30 = sphi 0, %s28
      %s31 = sphi 0, %s29
      %s43 = sphi 0, %s45
      %s46 = sphi 0, %s43
      %s47 = sphi 0, %s46
      %s63 = sphi 0, %s47
      %s67 = sphi 0, %s67
      %s69 = sphi 0, %s67
      %s70 = sphi 0, %s69
      %s84 = sphi 0, %s70
      %s88 = sphi 0, %s88
      %s90 = sphi 0, %s88
      %s91 = sphi 0, %s90
      %s105 = sphi 0, %s91
      %s109 = sphi 0, %s109
      %s111 = sphi 0, %s109
      %s112 = sphi 0, %s111
      %s126 = sphi 0, %s112
      %s130 = sphi 0, %s130
      %s132 = sphi 0, %s130
      %s133 = sphi 0, %s132
      %s147 = sphi 0, %s133
      %s151 = sphi 0, %s151
      %s153 = sphi 0, %s151
      %s154 = sphi 0, %s153
      %s168 = sphi 0, %s154
    $region4: #{tpu_custom_call.1} parent=1 // loop_header_branch
      %22 = sbr.rel (%p20) target = $region8
    $region5: #{tpu_custom_call.1} parent=1 // loop_body
      %s24 = ssub.s32 %s19, 1
      %s25 = ssub.s32 %s19, 2
      %s32 = sadd.s32 1, %s27
      %p33 = scmp.ge.s32.totalorder %s32, 1
      %s34 = scalar_select %p33, 0, %s32
      %s35 = sadd.s32 1, %s26
      %s36 = scalar_select %p33, %s35, %s26
      %p37 = scmp.ge.s32.totalorder %s36, 2
      %s38 = scalar_select %p37, 0, %s36
      %s39 = ssub.s32 %s26, %s38
      %s40 = ssub.s32 %s27, %s34
      %s41 = sor.u32 %s39, %s40
      %p42 = scmp.eq.s32.totalorder %s41, 0
      %s44 = sadd.s32 %s43, 1
      %s45 = scalar_select %p42, %s43, %s44
      %p48 = pneg %p42
      %p49 = scmp.eq.s32.totalorder %s19, 1
      %p50 = por %p48, %p49
      %p51 = scmp.ne.s32.totalorder %s43, %s46
      %p52 = scmp.eq.s32.totalorder %s19, 0
      %p53 = por %p51, %p52
      %p54 = scmp.ne.s32.totalorder %s43, %s46
      %p55 = scmp.eq.s32.totalorder %s24, 1
      %p56 = por %p54, %p55
      %p57 = scmp.ne.s32.totalorder %s46, %s47
      %p58 = scmp.eq.s32.totalorder %s24, 0
      %p59 = por %p57, %p58
      %p60 = scmp.ne.s32.totalorder %s46, %s47
      %p61 = scmp.eq.s32.totalorder %s25, 1
      %p62 = por %p60, %p61
      %p64 = scmp.ne.s32.totalorder %s47, %s63
      %p65 = scmp.eq.s32.totalorder %s25, 0
      %p66 = por %p64, %p65
      %s68 = sadd.s32 %s67, 1
      %p71 = scmp.eq.s32.totalorder %s19, 1
      %p72 = scmp.ne.s32.totalorder %s67, %s69
      %p73 = scmp.eq.s32.totalorder %s19, 0
      %p74 = por %p72, %p73
      %p75 = scmp.ne.s32.totalorder %s67, %s69
      %p76 = scmp.eq.s32.totalorder %s24, 1
      %p77 = por %p75, %p76
      %p78 = scmp.ne.s32.totalorder %s69, %s70
      %p79 = scmp.eq.s32.totalorder %s24, 0
      %p80 = por %p78, %p79
      %p81 = scmp.ne.s32.totalorder %s69, %s70
      %p82 = scmp.eq.s32.totalorder %s25, 1
      %p83 = por %p81, %p82
      %p85 = scmp.ne.s32.totalorder %s70, %s84
      %p86 = scmp.eq.s32.totalorder %s25, 0
      %p87 = por %p85, %p86
      %s89 = sadd.s32 %s88, 1
      %p92 = scmp.eq.s32.totalorder %s19, 1
      %p93 = scmp.ne.s32.totalorder %s88, %s90
      %p94 = scmp.eq.s32.totalorder %s19, 0
      %p95 = por %p93, %p94
      %p96 = scmp.ne.s32.totalorder %s88, %s90
      %p97 = scmp.eq.s32.totalorder %s24, 1
      %p98 = por %p96, %p97
      %p99 = scmp.ne.s32.totalorder %s90, %s91
      %p100 = scmp.eq.s32.totalorder %s24, 0
      %p101 = por %p99, %p100
      %p102 = scmp.ne.s32.totalorder %s90, %s91
      %p103 = scmp.eq.s32.totalorder %s25, 1
      %p104 = por %p102, %p103
      %p106 = scmp.ne.s32.totalorder %s91, %s105
      %p107 = scmp.eq.s32.totalorder %s25, 0
      %p108 = por %p106, %p107
      %s110 = sadd.s32 %s109, 1
      %p113 = scmp.eq.s32.totalorder %s19, 1
      %p114 = scmp.ne.s32.totalorder %s109, %s111
      %p115 = scmp.eq.s32.totalorder %s19, 0
      %p116 = por %p114, %p115
      %p117 = scmp.ne.s32.totalorder %s109, %s111
      %p118 = scmp.eq.s32.totalorder %s24, 1
      %p119 = por %p117, %p118
      %p120 = scmp.ne.s32.totalorder %s111, %s112
      %p121 = scmp.eq.s32.totalorder %s24, 0
      %p122 = por %p120, %p121
      %p123 = scmp.ne.s32.totalorder %s111, %s112
      %p124 = scmp.eq.s32.totalorder %s25, 1
      %p125 = por %p123, %p124
      %p127 = scmp.ne.s32.totalorder %s112, %s126
      %p128 = scmp.eq.s32.totalorder %s25, 0
      %p129 = por %p127, %p128
      %s131 = sadd.s32 %s130, 1
      %p134 = scmp.eq.s32.totalorder %s19, 1
      %p135 = scmp.ne.s32.totalorder %s130, %s132
      %p136 = scmp.eq.s32.totalorder %s19, 0
      %p137 = por %p135, %p136
      %p138 = scmp.ne.s32.totalorder %s130, %s132
      %p139 = scmp.eq.s32.totalorder %s24, 1
      %p140 = por %p138, %p139
      %p141 = scmp.ne.s32.totalorder %s132, %s133
      %p142 = scmp.eq.s32.totalorder %s24, 0
      %p143 = por %p141, %p142
      %p144 = scmp.ne.s32.totalorder %s132, %s133
      %p145 = scmp.eq.s32.totalorder %s25, 1
      %p146 = por %p144, %p145
      %p148 = scmp.ne.s32.totalorder %s133, %s147
      %p149 = scmp.eq.s32.totalorder %s25, 0
      %p150 = por %p148, %p149
      %s152 = sadd.s32 %s151, 1
      %p155 = scmp.eq.s32.totalorder %s19, 1
      %p156 = scmp.ne.s32.totalorder %s151, %s153
      %p157 = scmp.eq.s32.totalorder %s19, 0
      %p158 = por %p156, %p157
      %p159 = scmp.ne.s32.totalorder %s151, %s153
      %p160 = scmp.eq.s32.totalorder %s24, 1
      %p161 = por %p159, %p160
      %p162 = scmp.ne.s32.totalorder %s153, %s154
      %p163 = scmp.eq.s32.totalorder %s24, 0
      %p164 = por %p162, %p163
      %p165 = scmp.ne.s32.totalorder %s153, %s154
      %p166 = scmp.eq.s32.totalorder %s25, 1
      %p167 = por %p165, %p166
      %p169 = scmp.ne.s32.totalorder %s154, %s168
      %p170 = scmp.eq.s32.totalorder %s25, 0
      %p171 = por %p169, %p170
      %p172 = scmp.le.s32.totalorder 1, %s19
      %p173 = scmp.lt.s32.totalorder %s19, 3
      %p174 = pnand %p172, %p173
      %p175 = pneg %p174
      // Predicated region
      $region9: #{tpu_custom_call.1} parent=5 // pred_check
        _
      $region10: #{tpu_custom_call.1} parent=5 // pred_check_branch
        %177 = sbr.rel (%p174) target = $region12
      $region11: #{tpu_custom_call.1} parent=5 // pred_region
        %s178 = ssub.s32 %s19, 1
        // Predicated region
        $region13: #{tpu_custom_call.1} parent=11 // pred_check
          %p179 = pneg %p80
        $region14: #{tpu_custom_call.1} parent=11 // pred_check_branch
          %181 = sbr.rel (%p179) target = $region16
        $region15: #{tpu_custom_call.1} parent=11 // pred_region
          %s183 = ssub.s32 128, 128
          %184 = vsyncadd [#allocation8], %s183
          %s186 = sshll.u32 [#allocation7], 4
          %s187 = int_to_ptr.vmem [resolvable:$true] %s186
          %189 = dma.hbm_to_vmem [thread:$0]  %s1, 128, %s187, [#allocation8]
        $region16: #{tpu_custom_call.1} parent=11 // pred_fallthru
          _
        // Predicated region
        $region17: #{tpu_custom_call.1} parent=11 // pred_check
          %p190 = pneg %p101
        $region18: #{tpu_custom_call.1} parent=11 // pred_check_branch
          %192 = sbr.rel (%p190) target = $region20
        $region19: #{tpu_custom_call.1} parent=11 // pred_region
          %s194 = ssub.s32 128, 128
          %195 = vsyncadd [#allocation8], %s194
          %s197 = sshll.u32 [#allocation9], 4
          %s198 = int_to_ptr.vmem [resolvable:$true] %s197
          %200 = dma.hbm_to_vmem [thread:$0]  %s2, 128, %s198, [#allocation8]
        $region20: #{tpu_custom_call.1} parent=11 // pred_fallthru
          _
        // Predicated region
        $region21: #{tpu_custom_call.1} parent=11 // pred_check
          %p201 = pneg %p122
        $region22: #{tpu_custom_call.1} parent=11 // pred_check_branch
          %203 = sbr.rel (%p201) target = $region24
        $region23: #{tpu_custom_call.1} parent=11 // pred_region
          %s205 = ssub.s32 128, 128
          %206 = vsyncadd [#allocation11], %s205
          %s208 = sshll.u32 [#allocation10], 4
          %s209 = int_to_ptr.vmem [resolvable:$true] %s208
          %211 = dma.hbm_to_vmem [thread:$0]  %s3, 128, %s209, [#allocation11]
        $region24: #{tpu_custom_call.1} parent=11 // pred_fallthru
          _
      $region12: #{tpu_custom_call.1} parent=5 // pred_fallthru
        _
      %p212 = scmp.lt.s32.totalorder %s19, 2
      // Predicated region
      $region25: #{tpu_custom_call.1} parent=5 // pred_check
        %p213 = pneg %p212
      $region26: #{tpu_custom_call.1} parent=5 // pred_check_branch
        %215 = sbr.rel (%p213) target = $region28
      $region27: #{tpu_custom_call.1} parent=5 // pred_region
        // Predicated region
        $region29: #{tpu_custom_call.1} parent=27 // pred_check
          %p216 = pneg %p53
        $region30: #{tpu_custom_call.1} parent=27 // pred_check_branch
          %218 = sbr.rel (%p216) target = $region32
        $region31: #{tpu_custom_call.1} parent=27 // pred_region
          %s219 = sand.u32 %s43, 1
          %s220 = scalar_lea.sflag [#allocation5], %s219
          %s221 = sand.u32 %s43, 1
          %s222 = smul.addr %s221, 8
          %s223 = scalar_lea.vmem [#allocation4], %s222
          %s224 = smul.u32 2, %s27
          %s226 = ssub.s32 128, 128
          %227 = vsyncadd %s220, %s226
          %s228 = smul.addr %s26, 2
          %s229 = sadd.s32 %s224, %s228
          %s230 = smul.addr %s229, 64
          %s231 = scalar_lea.hbm %s0, %s230
          %s233 = sshll.u32 %s223, 4
          %s234 = int_to_ptr.vmem [resolvable:$true] %s233
          %236 = dma.hbm_to_vmem [thread:$0]  %s231, 128, %s234, %s220
        $region32: #{tpu_custom_call.1} parent=27 // pred_fallthru
          _
      $region28: #{tpu_custom_call.1} parent=5 // pred_fallthru
        _
      %p237 = scmp.le.s32.totalorder 1, %s19
      %p238 = scmp.lt.s32.totalorder %s19, 3
      %p239 = pnand %p237, %p238
      %p240 = pneg %p239
      // Predicated region
      $region33: #{tpu_custom_call.1} parent=5 // pred_check
        _
      $region34: #{tpu_custom_call.1} parent=5 // pred_check_branch
        %242 = sbr.rel (%p239) target = $region36
      $region35: #{tpu_custom_call.1} parent=5 // pred_region
        %s243 = ssub.s32 %s19, 1
        %s244 = sand.u32 %s46, 1
        %s245 = scalar_lea.sflag [#allocation5], %s244
        %s246 = sand.u32 %s46, 1
        %s247 = smul.addr %s246, 8
        %s248 = scalar_lea.vmem [#allocation4], %s247
        // Predicated region
        $region37: #{tpu_custom_call.1} parent=35 // pred_check
          %p249 = pneg %p59
        $region38: #{tpu_custom_call.1} parent=35 // pred_check_branch
          %251 = sbr.rel (%p249) target = $region40
        $region39: #{tpu_custom_call.1} parent=35 // pred_region
          %252 = dma.done %s245, 128
        $region40: #{tpu_custom_call.1} parent=35 // pred_fallthru
          _
        // Predicated region
        $region41: #{tpu_custom_call.1} parent=35 // pred_check
          %p253 = pneg %p80
        $region42: #{tpu_custom_call.1} parent=35 // pred_check_branch
          %255 = sbr.rel (%p253) target = $region44
        $region43: #{tpu_custom_call.1} parent=35 // pred_region
          %256 = dma.done [#allocation8], 128
        $region44: #{tpu_custom_call.1} parent=35 // pred_fallthru
          _
        // Predicated region
        $region45: #{tpu_custom_call.1} parent=35 // pred_check
          %p257 = pneg %p101
        $region46: #{tpu_custom_call.1} parent=35 // pred_check_branch
          %259 = sbr.rel (%p257) target = $region48
        $region47: #{tpu_custom_call.1} parent=35 // pred_region
          %260 = dma.done [#allocation8], 128
        $region48: #{tpu_custom_call.1} parent=35 // pred_fallthru
          _
        // Predicated region
        $region49: #{tpu_custom_call.1} parent=35 // pred_check
          %p261 = pneg %p122
        $region50: #{tpu_custom_call.1} parent=35 // pred_check_branch
          %263 = sbr.rel (%p261) target = $region52
        $region51: #{tpu_custom_call.1} parent=35 // pred_region
          %264 = dma.done [#allocation11], 128
        $region52: #{tpu_custom_call.1} parent=35 // pred_fallthru
          _
        %s265 = sand.u32 %s46, 1
        %s266 = scalar_lea.sflag [#allocation5], %s265
        %s267 = sand.u32 %s46, 1
        %s268 = smul.addr %s267, 8
        %s269 = scalar_lea.vmem [#allocation4], %s268
        %p270 = pneg %p59
        %p271 = pneg %p56
        %p272 = pneg %p80
        %p273 = pneg %p77
        %p274 = pneg %p101
        %p275 = pneg %p98
        %p276 = pneg %p122
        %p277 = pneg %p119
        %p278 = pneg %p143
        %p279 = pneg %p140
        %p280 = pneg %p164
        %p281 = pneg %p161
        %s282 = smul.u32 2, %s29
        %p283 = scmp.eq.s32.totalorder %s28, 0
        %p284 = scmp.eq.s32.totalorder %s29, 0
        %p285 = pnand %p283, %p284
        %p286 = pneg %p285
        %p287 = scmp.eq.s32.totalorder %s28, 1
        %p288 = pnand %p287, %p284
        %p289 = pneg %p288
        // Predicated region
        $region53: #{tpu_custom_call.1} parent=35 // pred_check
          _
        $region54: #{tpu_custom_call.1} parent=35 // pred_check_branch
          %291 = sbr.rel (%p285) target = $region56
        $region55: #{tpu_custom_call.1} parent=35 // pred_region
          %vm292 = vcmask 7168
          %293 = vst.msk [vmem:[#allocation2] sm:$0xff] %vm292, 0.0
          %294 = vst.msk [vmem:[#allocation3] sm:$0xff] %vm292, 0.0
        $region56: #{tpu_custom_call.1} parent=35 // pred_fallthru
          _
        %v295 = vld [vmem:[#allocation7] sm:$0xff]
        %v296 = vld [vmem:[%s248] sm:$0xff]
        %v298 = vcombine.high %v296, %v296
        %vm299 = vcmask 31744
        %v301 = vsel %vm299, %v295, 0
        %vm303 = vcmask 1043456
        %v304 = vsel %vm303, %v296, 0
        %v306 = vsel %vm303, %v298, 0
        %308 = vmatprep.subr.mxu0 %v306
        %309 = vmatpush1.msra.mxu0 %v304
        %310 = vmatprep.subr.mxu0 0.0
        %311 = vmatpush1.msra.mxu0 0.0
        %312 = vmatprep.subr.mxu0 0.0
        %313 = vmatpush1.msra.mxu0 0.0
        %314 = vmatprep.subr.mxu0 0.0
        %315 = vmatpush1.msra.mxu0 0.0
        %316 = vmatprep.subr.mxu0 0.0
        %317 = vmatpush1.msra.mxu0 0.0
        %318 = vmatprep.subr.mxu0 0.0
        %319 = vmatpush1.msra.mxu0 0.0
        %320 = vmatprep.subr.mxu0 0.0
        %321 = vmatpush1.msra.mxu0 0.0
        %322 = vmatprep.subr.mxu0 0.0
        %323 = vmatpush1.msra.mxu0 0.0
        %324 = vmatprep.subr.mxu0 0.0
        %325 = vmatpush1.msra.mxu0 0.0
        %326 = vmatprep.subr.mxu0 0.0
        %327 = vmatpush1.msra.mxu0 0.0
        %328 = vmatprep.subr.mxu0 0.0
        %329 = vmatpush1.msra.mxu0 0.0
        %330 = vmatprep.subr.mxu0 0.0
        %331 = vmatpush1.msra.mxu0 0.0
        %332 = vmatprep.subr.mxu0 0.0
        %333 = vmatpush1.msra.mxu0 0.0
        %334 = vmatprep.subr.mxu0 0.0
        %335 = vmatpush1.msra.mxu0 0.0
        %336 = vmatprep.subr.mxu0 0.0
        %337 = vmatpush1.msra.mxu0 0.0
        %338 = vmatprep.subr.mxu0 0.0
        %339 = vmatpush1.msra.mxu0 0.0
        %340 = vmatprep.subr.mxu0 0.0
        %341 = vmatpush1.msra.mxu0 0.0
        %342 = vmatprep.subr.mxu0 0.0
        %343 = vmatpush1.msra.mxu0 0.0
        %344 = vmatprep.subr.mxu0 0.0
        %345 = vmatpush1.msra.mxu0 0.0
        %346 = vmatprep.subr.mxu0 0.0
        %347 = vmatpush1.msra.mxu0 0.0
        %348 = vmatprep.subr.mxu0 0.0
        %349 = vmatpush1.msra.mxu0 0.0
        %350 = vmatprep.subr.mxu0 0.0
        %351 = vmatpush1.msra.mxu0 0.0
        %352 = vmatprep.subr.mxu0 0.0
        %353 = vmatpush1.msra.mxu0 0.0
        %354 = vmatprep.subr.mxu0 0.0
        %355 = vmatpush1.msra.mxu0 0.0
        %356 = vmatprep.subr.mxu0 0.0
        %357 = vmatpush1.msra.mxu0 0.0
        %358 = vmatprep.subr.mxu0 0.0
        %359 = vmatpush1.msra.mxu0 0.0
        %360 = vmatprep.subr.mxu0 0.0
        %361 = vmatpush1.msra.mxu0 0.0
        %362 = vmatprep.subr.mxu0 0.0
        %363 = vmatpush1.msra.mxu0 0.0
        %364 = vmatprep.subr.mxu0 0.0
        %365 = vmatpush1.msra.mxu0 0.0
        %366 = vmatprep.subr.mxu0 0.0
        %367 = vmatpush1.msra.mxu0 0.0
        %368 = vmatprep.subr.mxu0 0.0
        %369 = vmatpush1.msra.mxu0 0.0
        %370 = vmatprep.subr.mxu0 0.0
        %371 = vmatpush1.msra.mxu0 0.0
        %372 = vmatprep.mubr.f32.mxu0 0.0
        %373 = vmatmul.mubr.f32.gmra.mrb[0].mxu0 %v301
        %v374 = vpop.f32.mrb[0].mxu0
        %v375 = vadd.f32 0.0, %v374
        %v376 = vpop.f32.mrb[0].mxu0
        %v377 = vadd.f32 0.0, %v376
        %378 = vdwg.mxu0
        %v379 = vld [vmem:[#allocation2] sm:$0xff]
        %v380 = vadd.f32 %v375, %v377
        %381 = vadd.xlane.f32.xlu0 %v380
        %v382 = vpop.xlane.xlu0 %381
        %v383 = vadd.f32 %v379, %v382
        %vm384 = vcmask 7168
        %385 = vst.msk [vmem:[#allocation2] sm:$0xff] %vm384, %v383
        %v386 = vld [vmem:[#allocation3] sm:$0xff]
        %v387 = vmul.f32 %v375, %v375
        %v388 = vmul.f32 %v377, %v377
        %v389 = vadd.f32 %v387, %v388
        %390 = vadd.xlane.f32.xlu0 %v389
        %v391 = vpop.xlane.xlu0 %390
        %v392 = vadd.f32 %v386, %v391
        %393 = vst.msk [vmem:[#allocation3] sm:$0xff] %vm384, %v392
        // Predicated region
        $region57: #{tpu_custom_call.1} parent=35 // pred_check
          _
        $region58: #{tpu_custom_call.1} parent=35 // pred_check_branch
          %395 = sbr.rel (%p288) target = $region60
        $region59: #{tpu_custom_call.1} parent=35 // pred_region
          %v396 = vld [vmem:[#allocation2] sm:$0xff]
          %v397 = vmul.f32 %v396, 0.001953125
          %v398 = vld [vmem:[#allocation3] sm:$0xff]
          %v399 = vmul.f32 %v398, 0.001953125
          %v400 = vmul.f32 %v397, %v397
          %v401 = vsub.f32 %v399, %v400
          %v402 = vmax.f32 %v401, 0.0
          %v403 = vld [vmem:[#allocation9] sm:$0xff]
          %v404 = vadd.f32 %v402, 0.001
          %v405 = vrsqrt.pop %v404
          %v406 = vmul.f32 %v403, %v405
          %407 = vst.msk [vmem:[#allocation12] sm:$0xff] %vm384, %v406
          %v408 = vld [vmem:[#allocation10] sm:$0xff]
          %v409 = vmul.f32 %v397, %v406
          %v410 = vsub.f32 %v408, %v409
          %411 = vst.msk [vmem:[#allocation13] sm:$0xff] %vm384, %v410
        $region60: #{tpu_custom_call.1} parent=35 // pred_fallthru
          _
        // Predicated region
        $region61: #{tpu_custom_call.1} parent=35 // pred_check
          %p412 = pneg %p140
        $region62: #{tpu_custom_call.1} parent=35 // pred_check_branch
          %414 = sbr.rel (%p412) target = $region64
        $region63: #{tpu_custom_call.1} parent=35 // pred_region
          %s416 = ssub.s32 128, 128
          %417 = vsyncadd [#allocation6], %s416
          %s419 = sshll.u32 [#allocation12], 4
          %s420 = int_to_ptr.vmem [resolvable:$true] %s419
          %422 = dma.vmem_to_hbm [thread:$0]  %s420, 128, %s4, [#allocation6]
        $region64: #{tpu_custom_call.1} parent=35 // pred_fallthru
          _
        // Predicated region
        $region65: #{tpu_custom_call.1} parent=35 // pred_check
          %p423 = pneg %p161
        $region66: #{tpu_custom_call.1} parent=35 // pred_check_branch
          %425 = sbr.rel (%p423) target = $region68
        $region67: #{tpu_custom_call.1} parent=35 // pred_region
          %s427 = ssub.s32 128, 128
          %428 = vsyncadd [#allocation14], %s427
          %s430 = sshll.u32 [#allocation13], 4
          %s431 = int_to_ptr.vmem [resolvable:$true] %s430
          %433 = dma.vmem_to_hbm [thread:$0]  %s431, 128, %s5, [#allocation14]
        $region68: #{tpu_custom_call.1} parent=35 // pred_fallthru
          _
        // Predicated region
        $region69: #{tpu_custom_call.1} parent=35 // pred_check
          %p434 = pneg %p140
        $region70: #{tpu_custom_call.1} parent=35 // pred_check_branch
          %436 = sbr.rel (%p434) target = $region72
        $region71: #{tpu_custom_call.1} parent=35 // pred_region
          %437 = dma.done [#allocation6], 128
        $region72: #{tpu_custom_call.1} parent=35 // pred_fallthru
          _
        // Predicated region
        $region73: #{tpu_custom_call.1} parent=35 // pred_check
          %p438 = pneg %p161
        $region74: #{tpu_custom_call.1} parent=35 // pred_check_branch
          %440 = sbr.rel (%p438) target = $region76
        $region75: #{tpu_custom_call.1} parent=35 // pred_region
          %441 = dma.done [#allocation14], 128
        $region76: #{tpu_custom_call.1} parent=35 // pred_fallthru
          _
      $region36: #{tpu_custom_call.1} parent=5 // pred_fallthru
        _
      %p442 = scmp.le.s32.totalorder 2, %s19
      // Predicated region
      $region77: #{tpu_custom_call.1} parent=5 // pred_check
        %p443 = pneg %p442
      $region78: #{tpu_custom_call.1} parent=5 // pred_check_branch
        %445 = sbr.rel (%p443) target = $region80
      $region79: #{tpu_custom_call.1} parent=5 // pred_region
        %s446 = ssub.s32 %s19, 2
      $region80: #{tpu_custom_call.1} parent=5 // pred_fallthru
        _
    $region6: #{tpu_custom_call.1} parent=1 // loop_footer
      %s23 = sadd.s32 1, %s19
    $region7: #{tpu_custom_call.1} parent=1 // loop_footer_branch
      %18 = sbr.rel target = $region3
    $region8: #{tpu_custom_call.1} parent=1 // loop_exit
      _
    %447 = vsyncpa [#allocation5], 1
    %s448 = scalar_lea.sflag [#allocation5], 1
    %449 = vsyncpa %s448, 1
    %450 = vsyncpa [#allocation8], 1
    %451 = vsyncpa [#allocation11], 1
    %452 = vsyncpa [#allocation6], 1
    %s453 = scalar_lea.sflag [#allocation6], 1
    %454 = vsyncpa %s453, 1
    %455 = vsyncpa [#allocation14], 1

</llo_original>
